<compile_context>
chip_gen: v5e
topology: v5e:2x2
jax: 0.10.0
libtpu: 0.0.40
codegen_flags: <defaults>
</compile_context>

<pallas_src>
import math

import jax
import jax.numpy as jnp
from jax.experimental import pallas as pl
from jax.experimental.pallas import tpu as pltpu


def mlp_kernel(x_ref, w1_ref, b1_ref, w2_ref, b2_ref, out_ref, acc_ref):
    """Grid = (row_tiles, hidden_tiles); hidden axis is a reduction."""
    k = pl.program_id(1)

    @pl.when(k == 0)
    def _init():
        acc_ref[...] = jnp.zeros_like(acc_ref)

    # fc1 slab: [TM, E] @ [E, TH] -> [TM, TH] of the 4E hidden activation.
    h = jnp.dot(x_ref[...], w1_ref[...], preferred_element_type=jnp.float32)
    h = h + b1_ref[...]
    # exact (erf-based) GELU, matching torch.nn.functional.gelu default.
    h = 0.5 * h * (1.0 + jax.lax.erf(h * (1.0 / math.sqrt(2.0))))
    # partial fc2 contribution of this hidden tile: [TM, TH] @ [TH, E].
    acc_ref[...] += jnp.dot(h, w2_ref[...], preferred_element_type=jnp.float32)

    @pl.when(k == pl.num_programs(1) - 1)
    def _finalize():
        out_ref[...] = (acc_ref[...] + b2_ref[...]).astype(out_ref.dtype)


def _pick_row_tile(m, max_tile=256):
    t = min(max_tile, m)
    t -= t % 8
    while t >= 8:
        if m % t == 0:
            return t
        t -= 8
    return m          # full dim is always legal


def _pick_hidden_tile(h4, max_tile=512):
    t = min(max_tile, h4)
    t -= t % 128
    while t >= 128:
        if h4 % t == 0:
            return t
        t -= 128
    return h4         # full dim is always legal


def mlp_pallas(x, w1, b1, w2, b2, *, row_tile=None, hidden_tile=None):
    """y = gelu(x @ w1 + b1) @ w2 + b2   (eval semantics, no dropout)."""
    orig_shape = x.shape
    E = orig_shape[-1]
    H4 = w1.shape[1]
    assert w1.shape == (E, H4) and w2.shape == (H4, E)
    assert b1.size == H4 and b2.size == E

    M = 1
    for d in orig_shape[:-1]:
        M *= int(d)

    x2 = x.reshape(M, E)
    b1_2 = b1.reshape(1, H4)
    b2_2 = b2.reshape(1, E)

    tm = row_tile if row_tile is not None else _pick_row_tile(M)
    th = hidden_tile if hidden_tile is not None else _pick_hidden_tile(H4)
    assert M % tm == 0 and H4 % th == 0

    # rough per-step VMEM budget: double-buffered input blocks + out + acc,
    # with 2x headroom, clamped so it stays portable to v7x's 64 MiB VMEM.
    est = 4 * (2 * (tm * E + E * th + th + th * E + E) + 2 * tm * E + tm * E)
    vmem_limit = int(min(max(2 * est, 8 << 20), 96 << 20))

    out = pl.pallas_call(
        mlp_kernel,
        grid=(M // tm, H4 // th),
        in_specs=[
            pl.BlockSpec((tm, E), lambda i, k: (i, 0)),   # x rows (resident over k)
            pl.BlockSpec((E, th), lambda i, k: (0, k)),   # W1 hidden slab
            pl.BlockSpec((1, th), lambda i, k: (0, k)),   # b1 hidden slab
            pl.BlockSpec((th, E), lambda i, k: (k, 0)),   # W2 hidden slab
            pl.BlockSpec((1, E), lambda i, k: (0, 0)),    # b2 (constant block)
        ],
        out_specs=pl.BlockSpec((tm, E), lambda i, k: (i, 0)),
        out_shape=jax.ShapeDtypeStruct((M, E), x.dtype),
        scratch_shapes=[pltpu.VMEM((tm, E), jnp.float32)],
        compiler_params=pltpu.CompilerParams(
            dimension_semantics=("parallel", "arbitrary"),
            vmem_limit_bytes=vmem_limit,
        ),
    )(x2, w1, b1_2, w2, b2_2)
    return out.reshape(orig_shape)


# ------------------------- pure-JAX reference (torch semantics) ------------------------
def ref_mlp(x, w1, b1, w2, b2):
    h = jax.nn.gelu(x @ w1 + b1, approximate=False)
    return h @ w2 + b2


if __name__ == "__main__":
    B, S, E = 2, 8, 64            # batch, seq, embedding  (hidden = 4*E = 256)

    key = jax.random.PRNGKey(0)
    kx, k1, k2, k3, k4 = jax.random.split(key, 5)
    x = jax.random.normal(kx, (B, S, E), dtype=jnp.float32)
    w1 = 0.02 * jax.random.normal(k1, (E, 4 * E), dtype=jnp.float32)
    b1 = 0.02 * jax.random.normal(k2, (4 * E,), dtype=jnp.float32)
    w2 = 0.02 * jax.random.normal(k3, (4 * E, E), dtype=jnp.float32)
    b2 = 0.02 * jax.random.normal(k4, (E,), dtype=jnp.float32)

    # small explicit tiles so the demo exercises both grid axes
    # (2 row tiles x 2 hidden-reduction tiles) and the accumulator path.
    out = mlp_pallas(x, w1, b1, w2, b2, row_tile=8, hidden_tile=128)
    out = jax.block_until_ready(out)

    ref = ref_mlp(x, w1, b1, w2, b2)
    assert out.shape == (B, S, E)
    assert jnp.allclose(out, ref, atol=1e-4, rtol=1e-4), "MLP output mismatch"

    print("KERNEL_OK")
</pallas_src>

<mosaic_0001>
module attributes {stable_mosaic.version = 11 : i64} {
  func.func @mlp_kernel(%arg0: i32, %arg1: i32, %arg2: memref<8x64xf32, #tpu.memory_space<vmem>>, %arg3: memref<64x128xf32, #tpu.memory_space<vmem>>, %arg4: memref<1x128xf32, #tpu.memory_space<vmem>>, %arg5: memref<128x64xf32, #tpu.memory_space<vmem>>, %arg6: memref<1x64xf32, #tpu.memory_space<vmem>>, %arg7: memref<8x64xf32, #tpu.memory_space<vmem>>, %arg8: memref<8x64xf32, #tpu.memory_space<vmem>>) attributes {dimension_semantics = [#tpu.dimension_semantics<parallel>, #tpu.dimension_semantics<arbitrary>], iteration_bounds = array<i64: 2, 2>, scalar_prefetch = 0 : i64, scratch_operands = 1 : i64, tpu.core_type = #tpu.core_type<tc>, window_params = [{transform_indices = @transform_0, window_bounds = array<i64: 8, 64>}, {transform_indices = @transform_1, window_bounds = array<i64: 64, 128>}, {transform_indices = @transform_2, window_bounds = array<i64: 1, 128>}, {transform_indices = @transform_3, window_bounds = array<i64: 128, 64>}, {pipeline_mode = #tpu.pipeline_mode<synchronous>, transform_indices = @transform_4, window_bounds = array<i64: 1, 64>}, {transform_indices = @transform_5, window_bounds = array<i64: 8, 64>}]} {
    %c0_i32 = arith.constant 0 : i32
    %0 = arith.cmpi eq, %arg1, %c0_i32 : i32
    %1 = arith.extui %0 : i1 to i32
    %c0_i32_0 = arith.constant 0 : i32
    %2 = arith.cmpi ne, %1, %c0_i32_0 : i32
    scf.if %2 {
      %cst_17 = arith.constant 0.000000e+00 : f32
      %25 = vector.broadcast %cst_17 : f32 to vector<8x64xf32>
      %c0_18 = arith.constant 0 : index
      %c0_19 = arith.constant 0 : index
      %26 = vector.load %arg8[%c0_18, %c0_19] : memref<8x64xf32, #tpu.memory_space<vmem>>, vector<8x64xf32>
      tpu.vector_store %arg8[%c0_18, %c0_19], %25 {strides = array<i32>} : memref<8x64xf32, #tpu.memory_space<vmem>>, vector<8x64xf32>,
    } else {
    }
    %c0 = arith.constant 0 : index
    %c0_1 = arith.constant 0 : index
    %3 = vector.load %arg2[%c0, %c0_1] : memref<8x64xf32, #tpu.memory_space<vmem>>, vector<8x64xf32>
    %c0_2 = arith.constant 0 : index
    %c0_3 = arith.constant 0 : index
    %4 = vector.load %arg3[%c0_2, %c0_3] : memref<64x128xf32, #tpu.memory_space<vmem>>, vector<64x128xf32>
    %cst = arith.constant dense<0.000000e+00> : vector<8x128xf32>
    %5 = tpu.matmul %3, %4, %cst {dimension_numbers = #tpu.dot_dimension_numbers<[1], [0], [0], [1], [0, 0, 1, 1], [], []>} : vector<8x64xf32>, vector<64x128xf32>, vector<8x128xf32> -> vector<8x128xf32>
    %c0_4 = arith.constant 0 : index
    %c0_5 = arith.constant 0 : index
    %6 = vector.load %arg4[%c0_4, %c0_5] : memref<1x128xf32, #tpu.memory_space<vmem>>, vector<1x128xf32>
    %7 = vector.broadcast %6 : vector<1x128xf32> to vector<8x128xf32>
    %8 = arith.addf %5, %7 : vector<8x128xf32>
    %cst_6 = arith.constant 5.000000e-01 : f32
    %9 = vector.broadcast %cst_6 : f32 to vector<8x128xf32>
    %10 = arith.mulf %9, %8 : vector<8x128xf32>
    %cst_7 = arith.constant 0.707106769 : f32
    %11 = vector.broadcast %cst_7 : f32 to vector<8x128xf32>
    %12 = arith.mulf %8, %11 : vector<8x128xf32>
    %13 = math.erf %12 : vector<8x128xf32>
    %cst_8 = arith.constant 1.000000e+00 : f32
    %14 = vector.broadcast %cst_8 : f32 to vector<8x128xf32>
    %15 = arith.addf %14, %13 : vector<8x128xf32>
    %16 = arith.mulf %10, %15 : vector<8x128xf32>
    %c0_9 = arith.constant 0 : index
    %c0_10 = arith.constant 0 : index
    %17 = vector.load %arg8[%c0_9, %c0_10] : memref<8x64xf32, #tpu.memory_space<vmem>>, vector<8x64xf32>
    %c0_11 = arith.constant 0 : index
    %c0_12 = arith.constant 0 : index
    %18 = vector.load %arg5[%c0_11, %c0_12] : memref<128x64xf32, #tpu.memory_space<vmem>>, vector<128x64xf32>
    %cst_13 = arith.constant dense<0.000000e+00> : vector<8x64xf32>
    %19 = tpu.matmul %16, %18, %cst_13 {dimension_numbers = #tpu.dot_dimension_numbers<[1], [0], [0], [1], [0, 0, 1, 1], [], []>} : vector<8x128xf32>, vector<128x64xf32>, vector<8x64xf32> -> vector<8x64xf32>
    %20 = arith.addf %17, %19 : vector<8x64xf32>
    %c0_14 = arith.constant 0 : index
    %c0_15 = arith.constant 0 : index
    %21 = vector.load %arg8[%c0_14, %c0_15] : memref<8x64xf32, #tpu.memory_space<vmem>>, vector<8x64xf32>
    tpu.vector_store %arg8[%c0_14, %c0_15], %20 {strides = array<i32>} : memref<8x64xf32, #tpu.memory_space<vmem>>, vector<8x64xf32>,
    %c1_i32 = arith.constant 1 : i32
    %22 = arith.cmpi eq, %arg1, %c1_i32 : i32
    %23 = arith.extui %22 : i1 to i32
    %c0_i32_16 = arith.constant 0 : i32
    %24 = arith.cmpi ne, %23, %c0_i32_16 : i32
    scf.if %24 {
      %c0_17 = arith.constant 0 : index
      %c0_18 = arith.constant 0 : index
      %25 = vector.load %arg8[%c0_17, %c0_18] : memref<8x64xf32, #tpu.memory_space<vmem>>, vector<8x64xf32>
      %c0_19 = arith.constant 0 : index
      %c0_20 = arith.constant 0 : index
      %26 = vector.load %arg6[%c0_19, %c0_20] : memref<1x64xf32, #tpu.memory_space<vmem>>, vector<1x64xf32>
      %27 = vector.broadcast %26 : vector<1x64xf32> to vector<8x64xf32>
      %28 = arith.addf %25, %27 : vector<8x64xf32>
      %c0_21 = arith.constant 0 : index
      %c0_22 = arith.constant 0 : index
      %29 = vector.load %arg7[%c0_21, %c0_22] : memref<8x64xf32, #tpu.memory_space<vmem>>, vector<8x64xf32>
      tpu.vector_store %arg7[%c0_21, %c0_22], %28 {strides = array<i32>} : memref<8x64xf32, #tpu.memory_space<vmem>>, vector<8x64xf32>,
    } else {
    }
    return
  }
  func.func @transform_0(%arg0: i32, %arg1: i32) -> (i32, i32) {
    %c0_i32 = arith.constant 0 : i32
    %c0_i32_0 = arith.constant 0 : i32
    return %arg0, %c0_i32 : i32, i32
  }
  func.func @transform_1(%arg0: i32, %arg1: i32) -> (i32, i32) {
    %c0_i32 = arith.constant 0 : i32
    %c0_i32_0 = arith.constant 0 : i32
    return %c0_i32, %arg1 : i32, i32
  }
  func.func @transform_2(%arg0: i32, %arg1: i32) -> (i32, i32) {
    %c0_i32 = arith.constant 0 : i32
    %c0_i32_0 = arith.constant 0 : i32
    return %c0_i32, %arg1 : i32, i32
  }
  func.func @transform_3(%arg0: i32, %arg1: i32) -> (i32, i32) {
    %c0_i32 = arith.constant 0 : i32
    %c0_i32_0 = arith.constant 0 : i32
    return %arg1, %c0_i32 : i32, i32
  }
  func.func @transform_4(%arg0: i32, %arg1: i32) -> (i32, i32) {
    %c0_i32 = arith.constant 0 : i32
    %c0_i32_0 = arith.constant 0 : i32
    %c0_i32_1 = arith.constant 0 : i32
    return %c0_i32, %c0_i32_0 : i32, i32
  }
  func.func @transform_5(%arg0: i32, %arg1: i32) -> (i32, i32) {
    %c0_i32 = arith.constant 0 : i32
    %c0_i32_0 = arith.constant 0 : i32
    return %arg0, %c0_i32 : i32, i32
  }
}

</mosaic_0001>

<llo_original>
// kernel: tpu_custom_call.1
$region0: #{tpu_custom_call.1}
  #allocation0 [shape = 'u32[]', space=smem, size = 0x4, offset = 0x4, fixed_abs, tag = 'smem constant byte address 0x4 - core index']
  #allocation1 [shape = 'u32[72,128]{1,0:T(1,128)}', space=vmem, size = 0x9000, scoped, tag = 'internal scratch']
  #allocation2 [shape = 'f32[8,64]{1,0:T(8,128)}', space=vmem, size = 0x1000, scoped, tag = 'scratch operand']
  %s0 = inlined_call_operand.vmem [shape: f32[16,64], index: 0, kind: input, shape index: {}]
  %s1 = inlined_call_operand.vmem [shape: f32[64,256], index: 1, kind: input, shape index: {}]
  %s2 = inlined_call_operand.vmem [shape: f32[1,256], index: 2, kind: input, shape index: {}]
  %s3 = inlined_call_operand.vmem [shape: f32[256,64], index: 3, kind: input, shape index: {}]
  %s4 = inlined_call_operand.vmem [shape: f32[1,64], index: 4, kind: input, shape index: {}]
  %s5 = inlined_call_operand.hbm [shape: f32[16,64], index: 5, kind: output, shape index: {}]
  %s6 = sld [smem:[#allocation0]]
  $region99: #{tpu_custom_call.1} parent=0
    _
  %s8 = ssub.s32 1, %s6
  %s9 = scalar_select 0, %s8, %s6
  $region1: #{tpu_custom_call.1} parent=0
    #allocation3 [shape = 'u8[65536]{0}', space=vmem, size = 0x10000, scoped, tag = 'input window, operand 1']
    #allocation4 [shape = 'u8[8192]{0}', space=vmem, size = 0x2000, scoped, tag = 'output window, operand 0']
    #allocation5 [shape = 's32[2]{0}', space=sflag, size = 0x8, scoped, tag = 'scoped memory for tpu_custom_call.1']
    %10 = vsyncpa [#allocation5], 0
    %s11 = scalar_lea.sflag [#allocation5], 1
    %12 = vsyncpa %s11, 0
    loop: start=0, step=1, limit=6
    $region2: #{tpu_custom_call.1} parent=1 // loop_pre_header
      _
    $region3: #{tpu_custom_call.1} parent=1 // loop_header
      %s14 = sphi 0, %s18
      %p15 = scmp.ge.s32.totalorder %s14, 6
      %s21 = sphi 0, %s33
      %s22 = sphi 0, %s29
      %s23 = sphi 0, %s21
      %s24 = sphi 0, %s22
      %s25 = sphi 0, %s23
      %s26 = sphi 0, %s24
      %s36 = sphi 0, %s38
      %s39 = sphi 0, %s36
      %s40 = sphi 0, %s39
      %s56 = sphi 0, %s40
      %s62 = sphi 0, %s64
      %s65 = sphi 0, %s62
      %s66 = sphi 0, %s65
      %s82 = sphi 0, %s66
      %s88 = sphi 0, %s90
      %s91 = sphi 0, %s88
      %s92 = sphi 0, %s91
      %s108 = sphi 0, %s92
      %s114 = sphi 0, %s116
      %s117 = sphi 0, %s114
      %s118 = sphi 0, %s117
      %s134 = sphi 0, %s118
      %s138 = sphi 0, %s138
      %s140 = sphi 0, %s138
      %s141 = sphi 0, %s140
      %s155 = sphi 0, %s141
      %s161 = sphi 0, %s163
      %s164 = sphi 0, %s161
      %s165 = sphi 0, %s164
      %s181 = sphi 0, %s165
    $region4: #{tpu_custom_call.1} parent=1 // loop_header_branch
      %17 = sbr.rel (%p15) target = $region8
    $region5: #{tpu_custom_call.1} parent=1 // loop_body
      %s19 = ssub.s32 %s14, 1
      %s20 = ssub.s32 %s14, 2
      %s27 = sadd.s32 1, %s22
      %p28 = scmp.ge.s32.totalorder %s27, 2
      %s29 = scalar_select %p28, 0, %s27
      %s30 = sadd.s32 1, %s21
      %s31 = scalar_select %p28, %s30, %s21
      %p32 = scmp.ge.s32.totalorder %s31, 2
      %s33 = scalar_select %p32, 0, %s31
      %s34 = ssub.s32 %s21, %s33
      %p35 = scmp.eq.s32.totalorder %s34, 0
      %s37 = sadd.s32 %s36, 1
      %s38 = scalar_select %p35, %s36, %s37
      %p41 = pneg %p35
      %p42 = scmp.eq.s32.totalorder %s14, 3
      %p43 = por %p41, %p42
      %p44 = scmp.ne.s32.totalorder %s36, %s39
      %p45 = scmp.eq.s32.totalorder %s14, 0
      %p46 = por %p44, %p45
      %p47 = scmp.ne.s32.totalorder %s36, %s39
      %p48 = scmp.eq.s32.totalorder %s19, 3
      %p49 = por %p47, %p48
      %p50 = scmp.ne.s32.totalorder %s39, %s40
      %p51 = scmp.eq.s32.totalorder %s19, 0
      %p52 = por %p50, %p51
      %p53 = scmp.ne.s32.totalorder %s39, %s40
      %p54 = scmp.eq.s32.totalorder %s20, 3
      %p55 = por %p53, %p54
      %p57 = scmp.ne.s32.totalorder %s40, %s56
      %p58 = scmp.eq.s32.totalorder %s20, 0
      %p59 = por %p57, %p58
      %s60 = ssub.s32 %s22, %s29
      %p61 = scmp.eq.s32.totalorder %s60, 0
      %s63 = sadd.s32 %s62, 1
      %s64 = scalar_select %p61, %s62, %s63
      %p67 = pneg %p61
      %p68 = scmp.eq.s32.totalorder %s14, 3
      %p69 = por %p67, %p68
      %p70 = scmp.ne.s32.totalorder %s62, %s65
      %p71 = scmp.eq.s32.totalorder %s14, 0
      %p72 = por %p70, %p71
      %p73 = scmp.ne.s32.totalorder %s62, %s65
      %p74 = scmp.eq.s32.totalorder %s19, 3
      %p75 = por %p73, %p74
      %p76 = scmp.ne.s32.totalorder %s65, %s66
      %p77 = scmp.eq.s32.totalorder %s19, 0
      %p78 = por %p76, %p77
      %p79 = scmp.ne.s32.totalorder %s65, %s66
      %p80 = scmp.eq.s32.totalorder %s20, 3
      %p81 = por %p79, %p80
      %p83 = scmp.ne.s32.totalorder %s66, %s82
      %p84 = scmp.eq.s32.totalorder %s20, 0
      %p85 = por %p83, %p84
      %s86 = ssub.s32 %s22, %s29
      %p87 = scmp.eq.s32.totalorder %s86, 0
      %s89 = sadd.s32 %s88, 1
      %s90 = scalar_select %p87, %s88, %s89
      %p93 = pneg %p87
      %p94 = scmp.eq.s32.totalorder %s14, 3
      %p95 = por %p93, %p94
      %p96 = scmp.ne.s32.totalorder %s88, %s91
      %p97 = scmp.eq.s32.totalorder %s14, 0
      %p98 = por %p96, %p97
      %p99 = scmp.ne.s32.totalorder %s88, %s91
      %p100 = scmp.eq.s32.totalorder %s19, 3
      %p101 = por %p99, %p100
      %p102 = scmp.ne.s32.totalorder %s91, %s92
      %p103 = scmp.eq.s32.totalorder %s19, 0
      %p104 = por %p102, %p103
      %p105 = scmp.ne.s32.totalorder %s91, %s92
      %p106 = scmp.eq.s32.totalorder %s20, 3
      %p107 = por %p105, %p106
      %p109 = scmp.ne.s32.totalorder %s92, %s108
      %p110 = scmp.eq.s32.totalorder %s20, 0
      %p111 = por %p109, %p110
      %s112 = ssub.s32 %s22, %s29
      %p113 = scmp.eq.s32.totalorder %s112, 0
      %s115 = sadd.s32 %s114, 1
      %s116 = scalar_select %p113, %s114, %s115
      %p119 = pneg %p113
      %p120 = scmp.eq.s32.totalorder %s14, 3
      %p121 = por %p119, %p120
      %p122 = scmp.ne.s32.totalorder %s114, %s117
      %p123 = scmp.eq.s32.totalorder %s14, 0
      %p124 = por %p122, %p123
      %p125 = scmp.ne.s32.totalorder %s114, %s117
      %p126 = scmp.eq.s32.totalorder %s19, 3
      %p127 = por %p125, %p126
      %p128 = scmp.ne.s32.totalorder %s117, %s118
      %p129 = scmp.eq.s32.totalorder %s19, 0
      %p130 = por %p128, %p129
      %p131 = scmp.ne.s32.totalorder %s117, %s118
      %p132 = scmp.eq.s32.totalorder %s20, 3
      %p133 = por %p131, %p132
      %p135 = scmp.ne.s32.totalorder %s118, %s134
      %p136 = scmp.eq.s32.totalorder %s20, 0
      %p137 = por %p135, %p136
      %s139 = sadd.s32 %s138, 1
      %p142 = scmp.eq.s32.totalorder %s14, 3
      %p143 = scmp.ne.s32.totalorder %s138, %s140
      %p144 = scmp.eq.s32.totalorder %s14, 0
      %p145 = por %p143, %p144
      %p146 = scmp.ne.s32.totalorder %s138, %s140
      %p147 = scmp.eq.s32.totalorder %s19, 3
      %p148 = por %p146, %p147
      %p149 = scmp.ne.s32.totalorder %s140, %s141
      %p150 = scmp.eq.s32.totalorder %s19, 0
      %p151 = por %p149, %p150
      %p152 = scmp.ne.s32.totalorder %s140, %s141
      %p153 = scmp.eq.s32.totalorder %s20, 3
      %p154 = por %p152, %p153
      %p156 = scmp.ne.s32.totalorder %s141, %s155
      %p157 = scmp.eq.s32.totalorder %s20, 0
      %p158 = por %p156, %p157
      %s159 = ssub.s32 %s21, %s33
      %p160 = scmp.eq.s32.totalorder %s159, 0
      %s162 = sadd.s32 %s161, 1
      %s163 = scalar_select %p160, %s161, %s162
      %p166 = pneg %p160
      %p167 = scmp.eq.s32.totalorder %s14, 3
      %p168 = por %p166, %p167
      %p169 = scmp.ne.s32.totalorder %s161, %s164
      %p170 = scmp.eq.s32.totalorder %s14, 0
      %p171 = por %p169, %p170
      %p172 = scmp.ne.s32.totalorder %s161, %s164
      %p173 = scmp.eq.s32.totalorder %s19, 3
      %p174 = por %p172, %p173
      %p175 = scmp.ne.s32.totalorder %s164, %s165
      %p176 = scmp.eq.s32.totalorder %s19, 0
      %p177 = por %p175, %p176
      %p178 = scmp.ne.s32.totalorder %s164, %s165
      %p179 = scmp.eq.s32.totalorder %s20, 3
      %p180 = por %p178, %p179
      %p182 = scmp.ne.s32.totalorder %s165, %s181
      %p183 = scmp.eq.s32.totalorder %s20, 0
      %p184 = por %p182, %p183
      %p185 = scmp.le.s32.totalorder 1, %s14
      %p186 = scmp.lt.s32.totalorder %s14, 5
      %p187 = pnand %p185, %p186
      %p188 = pneg %p187
      // Predicated region
      $region9: #{tpu_custom_call.1} parent=5 // pred_check
        _
      $region10: #{tpu_custom_call.1} parent=5 // pred_check_branch
        %190 = sbr.rel (%p187) target = $region12
      $region11: #{tpu_custom_call.1} parent=5 // pred_region
        %s191 = ssub.s32 %s14, 1
        // Predicated region
        $region13: #{tpu_custom_call.1} parent=11 // pred_check
          %p192 = pneg %p151
        $region14: #{tpu_custom_call.1} parent=11 // pred_check_branch
          %194 = sbr.rel (%p192) target = $region16
        $region15: #{tpu_custom_call.1} parent=11 // pred_region
          _
        $region16: #{tpu_custom_call.1} parent=11 // pred_fallthru
          _
      $region12: #{tpu_custom_call.1} parent=5 // pred_fallthru
        _
      %p195 = scmp.lt.s32.totalorder %s14, 4
      // Predicated region
      $region17: #{tpu_custom_call.1} parent=5 // pred_check
        %p196 = pneg %p195
      $region18: #{tpu_custom_call.1} parent=5 // pred_check_branch
        %198 = sbr.rel (%p196) target = $region20
      $region19: #{tpu_custom_call.1} parent=5 // pred_region
        // Predicated region
        $region21: #{tpu_custom_call.1} parent=19 // pred_check
          %p199 = pneg %p46
        $region22: #{tpu_custom_call.1} parent=19 // pred_check_branch
          %201 = sbr.rel (%p199) target = $region24
        $region23: #{tpu_custom_call.1} parent=19 // pred_region
          %p202 = scmp.lt.s32.totalorder %s21, 1
          %s203 = scalar_select %p202, %s21, 1
          %s204 = smul.addr %s203, 8
          %s205 = scalar_lea.vmem %s0, %s204
        $region24: #{tpu_custom_call.1} parent=19 // pred_fallthru
          _
        // Predicated region
        $region25: #{tpu_custom_call.1} parent=19 // pred_check
          %p206 = pneg %p72
        $region26: #{tpu_custom_call.1} parent=19 // pred_check_branch
          %208 = sbr.rel (%p206) target = $region28
        $region27: #{tpu_custom_call.1} parent=19 // pred_region
          %s209 = sand.u32 %s62, 1
          %s210 = sand.u32 %s62, 1
          %s211 = smul.addr %s210, 64
          %s212 = scalar_lea.vmem [#allocation3], %s211
          %s213 = smul.addr %s22, 8
          %s214 = scalar_lea.vmem %s1, %s213
          // Predicated region
          $region29: #{tpu_custom_call.1} parent=27 // pred_check
            _
          $region30: #{tpu_custom_call.1} parent=27 // pred_check_branch
            %216 = sbr.rel (0) target = $region32
          $region31: #{tpu_custom_call.1} parent=27 // pred_region
            // Predicated region
            $region33: #{tpu_custom_call.1} parent=31 // pred_check
              _
            $region34: #{tpu_custom_call.1} parent=31 // pred_check_branch
              %218 = sbr.rel (0) target = $region36
            $region35: #{tpu_custom_call.1} parent=31 // pred_region
              // Predicated region
              $region48: #{tpu_custom_call.1} parent=35 // pred_check
                _
              $region49: #{tpu_custom_call.1} parent=35 // pred_check_branch
                %248 = sbr.rel (0) target = $region51
              $region50: #{tpu_custom_call.1} parent=35 // pred_region
                loop: start=0, step=1, limit=1
                $region52: #{tpu_custom_call.1} parent=50 // loop_pre_header
                  _
                $region53: #{tpu_custom_call.1} parent=50 // loop_header
                  %s250 = sphi 0, %s254
                  %p251 = scmp.ge.s32.totalorder %s250, 1
                  %s255 = sphi %s214, %s214
                  %s256 = sphi %s212, %s212
                $region54: #{tpu_custom_call.1} parent=50 // loop_header_branch
                  %253 = sbr.rel (%p251) target = $region58
                $region55: #{tpu_custom_call.1} parent=50 // loop_body
                  %v257 = vld [vmem:[%s255] sm:$0xff]
                  %258 = vst [vmem:[%s256] sm:$0xff] %v257
                  %v259 = vld [vmem:[%s255 + $0x10] sm:$0xff]
                  %260 = vst [vmem:[%s256 + $0x8] sm:$0xff] %v259
                  %v261 = vld [vmem:[%s255 + $0x20] sm:$0xff]
                  %262 = vst [vmem:[%s256 + $0x10] sm:$0xff] %v261
                  %v263 = vld [vmem:[%s255 + $0x30] sm:$0xff]
                  %264 = vst [vmem:[%s256 + $0x18] sm:$0xff] %v263
                  %v265 = vld [vmem:[%s255 + $0x40] sm:$0xff]
                  %266 = vst [vmem:[%s256 + $0x20] sm:$0xff] %v265
                  %v267 = vld [vmem:[%s255 + $0x50] sm:$0xff]
                  %268 = vst [vmem:[%s256 + $0x28] sm:$0xff] %v267
                  %v269 = vld [vmem:[%s255 + $0x60] sm:$0xff]
                  %270 = vst [vmem:[%s256 + $0x30] sm:$0xff] %v269
                  %v271 = vld [vmem:[%s255 + $0x70] sm:$0xff]
                  %272 = vst [vmem:[%s256 + $0x38] sm:$0xff] %v271
                $region56: #{tpu_custom_call.1} parent=50 // loop_footer
                  %s254 = sadd.s32 1, %s250
                $region57: #{tpu_custom_call.1} parent=50 // loop_footer_branch
                  %249 = sbr.rel target = $region53
                $region58: #{tpu_custom_call.1} parent=50 // loop_exit
                  _
              $region51: #{tpu_custom_call.1} parent=35 // pred_fallthru
                _
              // Predicated region
              $region59: #{tpu_custom_call.1} parent=35 // pred_check
                _
              $region60: #{tpu_custom_call.1} parent=35 // pred_check_branch
                %274 = sbr.rel target = $region62
              $region61: #{tpu_custom_call.1} parent=35 // pred_region
                _
              $region62: #{tpu_custom_call.1} parent=35 // pred_fallthru
                _
            $region36: #{tpu_custom_call.1} parent=31 // pred_fallthru
              _
            // Predicated region
            $region37: #{tpu_custom_call.1} parent=31 // pred_check
              _
            $region38: #{tpu_custom_call.1} parent=31 // pred_check_branch
              %220 = sbr.rel target = $region40
            $region39: #{tpu_custom_call.1} parent=31 // pred_region
              %s222 = ssub.s32 256, 1
              loop: start=0, step=1, limit=1
              $region41: #{tpu_custom_call.1} parent=39 // loop_pre_header
                _
              $region42: #{tpu_custom_call.1} parent=39 // loop_header
                %s224 = sphi 0, %s228
                %p225 = scmp.ge.s32.totalorder %s224, 1
                %s229 = sphi %s214, %s214
                %s230 = sphi %s212, %s212
              $region43: #{tpu_custom_call.1} parent=39 // loop_header_branch
                %227 = sbr.rel (%p225) target = $region47
              $region44: #{tpu_custom_call.1} parent=39 // loop_body
                %v231 = vld [vmem:[%s229] sm:%s222]
                %232 = vst [vmem:[%s230] sm:%s222] %v231
                %v233 = vld [vmem:[%s229 + $0x10] sm:%s222]
                %234 = vst [vmem:[%s230 + $0x8] sm:%s222] %v233
                %v235 = vld [vmem:[%s229 + $0x20] sm:%s222]
                %236 = vst [vmem:[%s230 + $0x10] sm:%s222] %v235
                %v237 = vld [vmem:[%s229 + $0x30] sm:%s222]
                %238 = vst [vmem:[%s230 + $0x18] sm:%s222] %v237
                %v239 = vld [vmem:[%s229 + $0x40] sm:%s222]
                %240 = vst [vmem:[%s230 + $0x20] sm:%s222] %v239
                %v241 = vld [vmem:[%s229 + $0x50] sm:%s222]
                %242 = vst [vmem:[%s230 + $0x28] sm:%s222] %v241
                %v243 = vld [vmem:[%s229 + $0x60] sm:%s222]
                %244 = vst [vmem:[%s230 + $0x30] sm:%s222] %v243
                %v245 = vld [vmem:[%s229 + $0x70] sm:%s222]
                %246 = vst [vmem:[%s230 + $0x38] sm:%s222] %v245
              $region45: #{tpu_custom_call.1} parent=39 // loop_footer
                %s228 = sadd.s32 1, %s224
              $region46: #{tpu_custom_call.1} parent=39 // loop_footer_branch
                %223 = sbr.rel target = $region42
              $region47: #{tpu_custom_call.1} parent=39 // loop_exit
                _
            $region40: #{tpu_custom_call.1} parent=31 // pred_fallthru
              _
          $region32: #{tpu_custom_call.1} parent=27 // pred_fallthru
            _
          %275 = vnop
        $region28: #{tpu_custom_call.1} parent=19 // pred_fallthru
          _
        // Predicated region
        $region63: #{tpu_custom_call.1} parent=19 // pred_check
          %p276 = pneg %p98
        $region64: #{tpu_custom_call.1} parent=19 // pred_check_branch
          %278 = sbr.rel (%p276) target = $region66
        $region65: #{tpu_custom_call.1} parent=19 // pred_region
          %p279 = scmp.lt.s32.totalorder %s22, 1
          %s280 = scalar_select %p279, %s22, 1
          %s281 = scalar_lea.vmem %s2, %s280
        $region66: #{tpu_custom_call.1} parent=19 // pred_fallthru
          _
        // Predicated region
        $region67: #{tpu_custom_call.1} parent=19 // pred_check
          %p282 = pneg %p124
        $region68: #{tpu_custom_call.1} parent=19 // pred_check_branch
          %284 = sbr.rel (%p282) target = $region70
        $region69: #{tpu_custom_call.1} parent=19 // pred_region
          %s285 = smul.u32 16, %s22
          %p286 = scmp.lt.s32.totalorder %s285, 31
          %s287 = scalar_select %p286, %s285, 31
          %s288 = smul.addr %s287, 8
          %s289 = scalar_lea.vmem %s3, %s288
          %s290 = smul.u32 16, %s22
        $region70: #{tpu_custom_call.1} parent=19 // pred_fallthru
          _
      $region20: #{tpu_custom_call.1} parent=5 // pred_fallthru
        _
      %p291 = scmp.le.s32.totalorder 1, %s14
      %p292 = scmp.lt.s32.totalorder %s14, 5
      %p293 = pnand %p291, %p292
      %p294 = pneg %p293
      // Predicated region
      $region71: #{tpu_custom_call.1} parent=5 // pred_check
        _
      $region72: #{tpu_custom_call.1} parent=5 // pred_check_branch
        %296 = sbr.rel (%p293) target = $region74
      $region73: #{tpu_custom_call.1} parent=5 // pred_region
        %s297 = ssub.s32 %s14, 1
        %s298 = sand.u32 %s65, 1
        %s299 = sand.u32 %s65, 1
        %s300 = smul.addr %s299, 64
        %s301 = scalar_lea.vmem [#allocation3], %s300
        // Predicated region
        $region75: #{tpu_custom_call.1} parent=73 // pred_check
          %p302 = pneg %p78
        $region76: #{tpu_custom_call.1} parent=73 // pred_check_branch
          %304 = sbr.rel (%p302) target = $region78
        $region77: #{tpu_custom_call.1} parent=73 // pred_region
          _
        $region78: #{tpu_custom_call.1} parent=73 // pred_fallthru
          _
        %p305 = scmp.lt.s32.totalorder %s23, 1
        %s306 = scalar_select %p305, %s23, 1
        %s307 = smul.addr %s306, 8
        %s308 = scalar_lea.vmem %s0, %s307
        %p309 = pneg %p52
        %p310 = pneg %p49
        %s311 = sand.u32 %s65, 1
        %s312 = sand.u32 %s65, 1
        %s313 = smul.addr %s312, 64
        %s314 = scalar_lea.vmem [#allocation3], %s313
        %p315 = pneg %p78
        %p316 = pneg %p75
        %p317 = scmp.lt.s32.totalorder %s24, 1
        %s318 = scalar_select %p317, %s24, 1
        %s319 = scalar_lea.vmem %s2, %s318
        %p320 = pneg %p104
        %p321 = pneg %p101
        %s322 = smul.u32 16, %s24
        %p323 = scmp.lt.s32.totalorder %s322, 31
        %s324 = scalar_select %p323, %s322, 31
        %s325 = smul.addr %s324, 8
        %s326 = scalar_lea.vmem %s3, %s325
        %p327 = pneg %p130
        %p328 = pneg %p127
        %p329 = pneg %p151
        %p330 = pneg %p148
        %p331 = pneg %p177
        %p332 = pneg %p174
        %s333 = sand.u32 %s164, 1
        %s334 = scalar_lea.sflag [#allocation5], %s333
        %s335 = sand.u32 %s164, 1
        %s336 = smul.addr %s335, 8
        %s337 = scalar_lea.vmem [#allocation4], %s336
        %p338 = scmp.lt.s32.totalorder %s23, 1
        %s339 = scalar_select %p338, %s23, 1
        %s340 = smul.addr %s339, 8
        %s341 = scalar_lea.vmem %s0, %s340
        %p342 = scmp.lt.s32.totalorder %s24, 1
        %s343 = scalar_select %p342, %s24, 1
        %s344 = scalar_lea.vmem %s2, %s343
        %s345 = smul.u32 16, %s24
        %p346 = scmp.lt.s32.totalorder %s345, 31
        %s347 = scalar_select %p346, %s345, 31
        %s348 = smul.addr %s347, 8
        %s349 = scalar_lea.vmem %s3, %s348
        %s350 = smul.u32 16, %s24
        %p351 = scmp.eq.s32.totalorder %s24, 0
        // Predicated region
        $region79: #{tpu_custom_call.1} parent=73 // pred_check
          %p352 = pneg %p351
        $region80: #{tpu_custom_call.1} parent=73 // pred_check_branch
          %354 = sbr.rel (%p352) target = $region82
        $region81: #{tpu_custom_call.1} parent=73 // pred_region
          %vm355 = vcmask 523264
          %356 = vst.msk [vmem:[#allocation2] sm:$0xff] %vm355, 0.0
        $region82: #{tpu_custom_call.1} parent=73 // pred_fallthru
          _
        %v357 = vld [vmem:[%s341] sm:$0xff]
        %v358 = vld [vmem:[%s301] sm:$0xff]
        %v359 = vld [vmem:[%s301 + $0x8] sm:$0xff]
        %v360 = vld [vmem:[%s301 + $0x10] sm:$0xff]
        %v361 = vld [vmem:[%s301 + $0x18] sm:$0xff]
        %v362 = vld [vmem:[%s301 + $0x20] sm:$0xff]
        %v363 = vld [vmem:[%s301 + $0x28] sm:$0xff]
        %v364 = vld [vmem:[%s301 + $0x30] sm:$0xff]
        %v365 = vld [vmem:[%s301 + $0x38] sm:$0xff]
        %v366 = vld [vmem:[%s344] sm:$0x1]
        %v368 = vperm.slane %v366, 0
        %vm370 = vcmask 523264
        %v372 = vsel %vm370, %v357, 0
        %374 = vmatpush.msra.mxu0 0.0
        %375 = vmatpush.msra.mxu0 0.0
        %376 = vmatpush.msra.mxu0 0.0
        %377 = vmatpush.msra.mxu0 0.0
        %378 = vmatpush.msra.mxu0 0.0
        %379 = vmatpush.msra.mxu0 0.0
        %380 = vmatpush.msra.mxu0 0.0
        %381 = vmatpush.msra.mxu0 0.0
        %382 = vmatpush.msra.mxu0 %v365
        %383 = vmatpush.msra.mxu0 %v364
        %384 = vmatpush.msra.mxu0 %v363
        %385 = vmatpush.msra.mxu0 %v362
        %386 = vmatpush.msra.mxu0 %v361
        %387 = vmatpush.msra.mxu0 %v360
        %388 = vmatpush.msra.mxu0 %v359
        %389 = vmatpush.msra.mxu0 %v358
        %390 = vmatmul.f32.gmra.mxu0 %v372
        %v391 = vpop.f32.mrf.mxu0
        %v392 = vadd.f32 %v368, %v391
        %393 = vdwg.mxu0
        %v394 = vmul.f32 %v392, 0.5
        %v395 = vmul.f32 %v392, 0.70710677
        %v396 = vmul.f32 %v395, %v395
        %v397 = vmin.f32 16.0, %v396
        %v398 = vmul.f32 %v397, 2.1237322e-06
        %v399 = vadd.f32 %v398, 0.00028619796
        %v400 = vmul.f32 %v397, %v399
        %v401 = vadd.f32 %v400, 0.0036580483
        %v402 = vmul.f32 %v397, %v401
        %v403 = vadd.f32 %v402, 0.05243302
        %v404 = vmul.f32 %v397, %v403
        %v405 = vadd.f32 %v404, 0.18741608
        %v406 = vmul.f32 %v397, %v405
        %v407 = vadd.f32 %v406, 1.1283791
        %v408 = vmul.f32 %v395, %v407
        %v409 = vmul.f32 %v397, 3.8918573e-05
        %v410 = vadd.f32 %v409, 0.001143296
        %v411 = vmul.f32 %v397, %v410
        %v412 = vadd.f32 %v411, 0.014752088
        %v413 = vmul.f32 %v397, %v412
        %v414 = vadd.f32 %v413, 0.112945676
        %v415 = vmul.f32 %v397, %v414
        %v416 = vadd.f32 %v415, 0.4994258
        %v417 = vmul.f32 %v397, %v416
        %v418 = vadd.f32 %v417, 1.0
        %v419 = vrcp.pop %v418
        %v420 = vmul.f32 %v418, %v419
        %v421 = vsub.f32 1.0, %v420
        %v422 = vmul.f32 %v419, %v421
        %v423 = vadd.f32 %v419, %v422
        %vm424 = vweird.f32 %v418
        %vm425 = vweird.f32 %v419
        %vm426 = vmor %vm424, %vm425
        %v427 = vsel %vm426, %v419, %v423
        %v428 = vand.u32 2147483647, %v418
        %vm429 = vcmp.eq.f32.partialorder %v428, 8.507059e+37
        %v430 = vand.u32 %v418, 2147483648
        %v431 = vor.u32 1.1754944e-38, %v430
        %v432 = vsel %vm429, %v431, %v427
        %v433 = vmul.f32 %v408, %v432
        %v434 = vmin.f32 %v433, 1.0
        %v435 = vmax.f32 %v434, -1.0
        %v436 = vadd.f32 %v435, 1.0
        %v437 = vmul.f32 %v394, %v436
        %v438 = vld [vmem:[#allocation2] sm:$0xff]
        %v439 = vld [vmem:[%s349] sm:$0xff]
        %v440 = vld [vmem:[%s349 + $0x8] sm:$0xff]
        %v441 = vld [vmem:[%s349 + $0x10] sm:$0xff]
        %v442 = vld [vmem:[%s349 + $0x18] sm:$0xff]
        %v443 = vld [vmem:[%s349 + $0x20] sm:$0xff]
        %v444 = vld [vmem:[%s349 + $0x28] sm:$0xff]
        %v445 = vld [vmem:[%s349 + $0x30] sm:$0xff]
        %v446 = vld [vmem:[%s349 + $0x38] sm:$0xff]
        %v447 = vld [vmem:[%s349 + $0x40] sm:$0xff]
        %v448 = vld [vmem:[%s349 + $0x48] sm:$0xff]
        %v449 = vld [vmem:[%s349 + $0x50] sm:$0xff]
        %v450 = vld [vmem:[%s349 + $0x58] sm:$0xff]
        %v451 = vld [vmem:[%s349 + $0x60] sm:$0xff]
        %v452 = vld [vmem:[%s349 + $0x68] sm:$0xff]
        %v453 = vld [vmem:[%s349 + $0x70] sm:$0xff]
        %v454 = vld [vmem:[%s349 + $0x78] sm:$0xff]
        %455 = vmatpush.msra.mxu0 %v454
        %456 = vmatpush.msra.mxu0 %v453
        %457 = vmatpush.msra.mxu0 %v452
        %458 = vmatpush.msra.mxu0 %v451
        %459 = vmatpush.msra.mxu0 %v450
        %460 = vmatpush.msra.mxu0 %v449
        %461 = vmatpush.msra.mxu0 %v448
        %462 = vmatpush.msra.mxu0 %v447
        %463 = vmatpush.msra.mxu0 %v446
        %464 = vmatpush.msra.mxu0 %v445
        %465 = vmatpush.msra.mxu0 %v444
        %466 = vmatpush.msra.mxu0 %v443
        %467 = vmatpush.msra.mxu0 %v442
        %468 = vmatpush.msra.mxu0 %v441
        %469 = vmatpush.msra.mxu0 %v440
        %470 = vmatpush.msra.mxu0 %v439
        %471 = vmatmul.f32.gmra.mxu0 %v437
        %v472 = vpop.f32.mrf.mxu0
        %v473 = vadd.f32 0.0, %v472
        %474 = vdwg.mxu0
        %v475 = vadd.f32 %v438, %v473
        %476 = vst.msk [vmem:[#allocation2] sm:$0xff] %vm370, %v475
        %p477 = scmp.eq.s32.totalorder %s24, 1
        // Predicated region
        $region83: #{tpu_custom_call.1} parent=73 // pred_check
          %p478 = pneg %p477
        $region84: #{tpu_custom_call.1} parent=73 // pred_check_branch
          %480 = sbr.rel (%p478) target = $region86
        $region85: #{tpu_custom_call.1} parent=73 // pred_region
          %v481 = vld [vmem:[#allocation2] sm:$0xff]
          %v482 = vld [vmem:[%s4] sm:$0x1]
          %v484 = vperm.slane %v482, 0
          %v486 = vadd.f32 %v481, %v484
          %487 = vst.msk [vmem:[%s337] sm:$0xff] %vm370, %v486
        $region86: #{tpu_custom_call.1} parent=73 // pred_fallthru
          _
        %s488 = sand.u32 %s164, 1
        %s489 = scalar_lea.sflag [#allocation5], %s488
        %s490 = sand.u32 %s164, 1
        %s491 = smul.addr %s490, 8
        %s492 = scalar_lea.vmem [#allocation4], %s491
        // Predicated region
        $region87: #{tpu_custom_call.1} parent=73 // pred_check
          %p493 = pneg %p174
        $region88: #{tpu_custom_call.1} parent=73 // pred_check_branch
          %495 = sbr.rel (%p493) target = $region90
        $region89: #{tpu_custom_call.1} parent=73 // pred_region
          %497 = vsyncadd %s489, 0
          %s498 = smul.addr %s23, 8
          %s499 = scalar_lea.hbm %s5, %s498
          %s501 = sshll.u32 %s492, 4
          %s502 = int_to_ptr.vmem [resolvable:$true] %s501
          %s503 = sshll.u32 %s499, 4
          %s504 = int_to_ptr.hbm [resolvable:$true] %s503
          %506 = dma.vmem_to_hbm [thread:$0]  %s502, 128, %s504, %s489
        $region90: #{tpu_custom_call.1} parent=73 // pred_fallthru
          _
      $region74: #{tpu_custom_call.1} parent=5 // pred_fallthru
        _
      %p507 = scmp.le.s32.totalorder 2, %s14
      // Predicated region
      $region91: #{tpu_custom_call.1} parent=5 // pred_check
        %p508 = pneg %p507
      $region92: #{tpu_custom_call.1} parent=5 // pred_check_branch
        %510 = sbr.rel (%p508) target = $region94
      $region93: #{tpu_custom_call.1} parent=5 // pred_region
        %s511 = ssub.s32 %s14, 2
        // Predicated region
        $region95: #{tpu_custom_call.1} parent=93 // pred_check
          %p512 = pneg %p180
        $region96: #{tpu_custom_call.1} parent=93 // pred_check_branch
          %514 = sbr.rel (%p512) target = $region98
        $region97: #{tpu_custom_call.1} parent=93 // pred_region
          %s515 = sand.u32 %s165, 1
          %s516 = scalar_lea.sflag [#allocation5], %s515
          %s517 = sand.u32 %s165, 1
          %s518 = smul.addr %s517, 8
          %s519 = scalar_lea.vmem [#allocation4], %s518
          %521 = dma.done %s516, 128
        $region98: #{tpu_custom_call.1} parent=93 // pred_fallthru
          _
      $region94: #{tpu_custom_call.1} parent=5 // pred_fallthru
        _
    $region6: #{tpu_custom_call.1} parent=1 // loop_footer
      %s18 = sadd.s32 1, %s14
    $region7: #{tpu_custom_call.1} parent=1 // loop_footer_branch
      %13 = sbr.rel target = $region3
    $region8: #{tpu_custom_call.1} parent=1 // loop_exit
      _
    %522 = vsyncpa [#allocation5], 1
    %s523 = scalar_lea.sflag [#allocation5], 1
    %524 = vsyncpa %s523, 1

</llo_original>
